<compile_context>
chip_gen: v7x
topology: tpu7x:2x2x1
jax: 0.10.0
libtpu: 0.0.40
codegen_flags: <defaults>
</compile_context>

<pallas_src>
import jax
import jax.numpy as jnp
from jax.experimental import pallas as pl
from jax.experimental.pallas import tpu as pltpu


def _round_up(x, m):
    return (x + m - 1) // m * m


def _vmem_limit_bytes():
    """Generation-aware scoped-VMEM request: half of physical VMEM, capped at
    64 MiB (=> 64 MiB on v5e/v6e with 128 MiB VMEM, 32 MiB on v7x with 64 MiB)."""
    cap = None
    try:
        cap = getattr(pltpu.get_tpu_info(), "vmem_capacity_bytes", None)
    except Exception:
        cap = None
    if not cap:
        cap = 64 * 1024 * 1024  # conservative default = v7x physical VMEM per TC
    return min(int(cap) // 2, 64 * 1024 * 1024)


def bayesian_rbf_matvec_kernel(invh_ref, xt_ref, out_ref):
    # invh_ref: (d_pad, 1)      f32 -- 1/q_h, zero in padded rows
    # xt_ref:   (d_pad, TILE_N) f32 -- X^T tile, n on the 128-lane axis
    # out_ref:  (1, TILE_N)     f32
    #
    # y[0, j] = sum_d inv_h[d] * X[j, d] == (X @ (1/q_h))[j]
    # VPU broadcast-multiply + sublane reduction; MXU stays idle (K=d is tiny,
    # the systolic array would be mostly padding). Pure HBM streaming over X.
    out_ref[...] = jnp.sum(invh_ref[...] * xt_ref[...], axis=0, keepdims=True)


def bayesian_rbf_forward(X, q_mu_h, L, eps):
    """X: (n, d) f32, q_mu_h: (d,), L: (d, d), eps: (d,) -> y_pred: (n,) f32.

    Matches the PyTorch forward: q_h = q_mu_h + L @ eps ; y = X @ (1 / q_h).
    """
    n, d = X.shape

    # --- MVN reparameterized sample + reciprocal (tiny O(d^2), hoisted) -------
    q_h = q_mu_h + L @ eps
    inv_h = (1.0 / q_h).astype(jnp.float32)  # exact reciprocal (torch semantics)

    # --- small-input fast path: launch/pad overhead would dominate ------------
    if n * d * 4 < 128 * 1024 or n < 256:
        return X.astype(jnp.float32) @ inv_h

    d_pad = _round_up(d, 8)  # sublane multiple

    # --- tile sizing from the VMEM budget --------------------------------------
    vmem_limit = _vmem_limit_bytes()
    budget = int(vmem_limit * 0.75)                 # headroom for pipeline bufs
    # bytes per output lane: double-buffered X column (2*4*d_pad)
    # + double-buffered output element (2*4); inv_h is negligible.
    bytes_per_lane = 2 * 4 * d_pad + 2 * 4
    tile_n_max = (budget // bytes_per_lane) // 128 * 128
    tile_n_max = min(tile_n_max, 256 * 1024)        # long-DMA sweet spot
    if tile_n_max < 128:
        # d too large for a single-pass VMEM-resident contraction; a d-tiled
        # accumulator grid axis would be the Pallas path here -- fall back.
        return X.astype(jnp.float32) @ inv_h

    # Pick the tile COUNT first, then derive tile_n: pad waste stays <128 lanes
    # per tile and the grid never collapses to a single step (keeps both v7x
    # TensorCores busy via the "parallel" dimension; no-op on v5e/v6e).
    min_tiles = 2 if n >= 256 else 1
    num_tiles = max(min_tiles, pl.cdiv(n, tile_n_max))
    tile_n = _round_up(pl.cdiv(n, num_tiles), 128)
    n_pad = num_tiles * tile_n

    # X streamed as (d_pad, n_pad): n on the 128-lane axis, d on sublanes.
    # Single fused pad+transpose (one HBM pass), zero padding is harmless:
    # padded d-rows multiply against inv_h pad = 0, padded n-columns are
    # sliced off below.
    # TODO(synk): if the producer can emit X already as (d, n), pass it through
    # and skip this wrapper HBM pass entirely.
    xt = jnp.pad(X.astype(jnp.float32), ((0, n_pad - n), (0, d_pad - d))).T
    invh_col = jnp.pad(inv_h, (0, d_pad - d)).reshape(d_pad, 1)

    y_row = pl.pallas_call(
        bayesian_rbf_matvec_kernel,
        out_shape=jax.ShapeDtypeStruct((1, n_pad), jnp.float32),
        grid=(num_tiles,),
        in_specs=[
            pl.BlockSpec((d_pad, 1), lambda i: (0, 0)),        # inv_h, resident
            pl.BlockSpec((d_pad, tile_n), lambda i: (0, i)),   # X tile, streamed
        ],
        out_specs=pl.BlockSpec((1, tile_n), lambda i: (0, i)),  # lane-dense out
        compiler_params=pltpu.CompilerParams(
            dimension_semantics=("parallel",),
            vmem_limit_bytes=vmem_limit,
        ),
        cost_estimate=pl.CostEstimate(
            flops=2 * n * d,
            bytes_accessed=(n * d + n) * 4,
            transcendentals=0,
        ),
    )(invh_col, xt)

    return y_row[0, :n]


def calculate_sigma_rbf(coords, rbf_sigma=1.0):
    """coords: (d, 1). Vectorized equivalent of the PyTorch double loop
    (diagonal is exp(0) = 1, matching the torch.eye initialization)."""
    diff = coords - coords.T  # (d, d)
    return jnp.exp(-(diff ** 2) / (2.0 * rbf_sigma ** 2))


if __name__ == "__main__":
    key = jax.random.PRNGKey(0)
    n, d = 8192, 8          # big enough to take the Pallas streaming path
    init_h = 1.0
    rbf_sigma = 1.0

    k_x, k_eps = jax.random.split(key)

    # forward input X: (n, d)
    X = jax.random.normal(k_x, (n, d), dtype=jnp.float32)

    # deterministic "module parameters" (shapes from __init__)
    coords = jnp.arange(d, dtype=jnp.float32).reshape(-1, 1)     # (d, 1)
    Sigma_RBF = calculate_sigma_rbf(coords, rbf_sigma)           # (d, d)
    q_mu_h = jnp.ones((d,), dtype=jnp.float32) * init_h          # (d,)
    # TODO(synk): gpytorch MVN rsample internals (root decomposition + Gaussian
    # noise draw) have no Pallas equivalent; done as plain-JAX module setup.
    L = jnp.linalg.cholesky(Sigma_RBF + 1e-6 * jnp.eye(d)).astype(jnp.float32)
    eps = jax.random.normal(k_eps, (d,), dtype=jnp.float32)      # (d,)

    y = bayesian_rbf_forward(X, q_mu_h, L, eps)
    jax.block_until_ready(y)

    # pure-JAX reference check
    q_h_ref = q_mu_h + L @ eps
    y_ref = X @ (1.0 / q_h_ref)
    assert y.shape == (n,)
    assert jnp.allclose(y, y_ref, atol=1e-4, rtol=1e-4), (y, y_ref)

    print("KERNEL_OK")
</pallas_src>

<mosaic_0001>
module attributes {stable_mosaic.version = 11 : i64} {
  func.func @bayesian_rbf_matvec_kernel(%arg0: i32, %arg1: memref<8x1xf32, #tpu.memory_space<vmem>>, %arg2: memref<8x4096xf32, #tpu.memory_space<vmem>>, %arg3: memref<1x4096xf32, #tpu.memory_space<vmem>>) attributes {dimension_semantics = [#tpu.dimension_semantics<parallel>], iteration_bounds = array<i64: 2>, scalar_prefetch = 0 : i64, scratch_operands = 0 : i64, tpu.core_type = #tpu.core_type<tc>, window_params = [{pipeline_mode = #tpu.pipeline_mode<synchronous>, transform_indices = @transform_0, window_bounds = array<i64: 8, 1>}, {transform_indices = @transform_1, window_bounds = array<i64: 8, 4096>}, {transform_indices = @transform_2, window_bounds = array<i64: 1, 4096>}]} {
    %c0 = arith.constant 0 : index
    %c0_0 = arith.constant 0 : index
    %0 = vector.load %arg1[%c0, %c0_0] : memref<8x1xf32, #tpu.memory_space<vmem>>, vector<8x1xf32>
    %c0_1 = arith.constant 0 : index
    %c0_2 = arith.constant 0 : index
    %1 = vector.load %arg2[%c0_1, %c0_2] : memref<8x4096xf32, #tpu.memory_space<vmem>>, vector<8x4096xf32>
    %2 = vector.broadcast %0 : vector<8x1xf32> to vector<8x4096xf32>
    %3 = arith.mulf %2, %1 : vector<8x4096xf32>
    %cst = arith.constant dense<0.000000e+00> : vector<4096xf32>
    %4 = vector.multi_reduction <add>, %3, %cst [0] : vector<8x4096xf32> to vector<4096xf32>
    %5 = vector.shape_cast %4 : vector<4096xf32> to vector<1x4096xf32>
    %c0_3 = arith.constant 0 : index
    %c0_4 = arith.constant 0 : index
    %6 = vector.load %arg3[%c0_3, %c0_4] : memref<1x4096xf32, #tpu.memory_space<vmem>>, vector<1x4096xf32>
    tpu.vector_store %arg3[%c0_3, %c0_4], %5 {strides = array<i32>} : memref<1x4096xf32, #tpu.memory_space<vmem>>, vector<1x4096xf32>,
    return
  }
  func.func @transform_0(%arg0: i32) -> (i32, i32) {
    %c0_i32 = arith.constant 0 : i32
    %c0_i32_0 = arith.constant 0 : i32
    %c0_i32_1 = arith.constant 0 : i32
    return %c0_i32, %c0_i32_0 : i32, i32
  }
  func.func @transform_1(%arg0: i32) -> (i32, i32) {
    %c0_i32 = arith.constant 0 : i32
    %c0_i32_0 = arith.constant 0 : i32
    return %c0_i32, %arg0 : i32, i32
  }
  func.func @transform_2(%arg0: i32) -> (i32, i32) {
    %c0_i32 = arith.constant 0 : i32
    %c0_i32_0 = arith.constant 0 : i32
    return %c0_i32, %arg0 : i32, i32
  }
}

</mosaic_0001>

<llo_original>
// kernel: tpu_custom_call.1
$region0: #{tpu_custom_call.1}
  #allocation0 [shape = 'u32[]', space=smem, size = 0x4, offset = 0x4, fixed_abs, tag = 'smem constant byte address 0x4 - core index']
  #allocation1 [shape = 'u32[144,128]{1,0:T(1,128)}', space=vmem, size = 0x12000, scoped, tag = 'internal scratch']
  %s0 = inlined_call_operand.vmem [shape: f32[8,1], index: 0, kind: input, shape index: {}]
  %s1 = inlined_call_operand.hbm [shape: f32[8,8192], index: 1, kind: input, shape index: {}]
  %s2 = inlined_call_operand.hbm [shape: f32[1,8192], index: 2, kind: output, shape index: {}]
  %s3 = sld [smem:[#allocation0]]
  $region45: #{tpu_custom_call.1} parent=0
    _
  %s5 = ssub.s32 1, %s3
  %s6 = scalar_select 0, %s5, %s3
  $region1: #{tpu_custom_call.1} parent=0
    #allocation2 [shape = 'u8[262144]{0}', space=vmem, size = 0x40000, scoped, tag = 'input window, operand 1']
    #allocation3 [shape = 's32[2]{0}', space=sflag, size = 0x8, scoped, tag = 'scoped memory for tpu_custom_call.1']
    #allocation4 [shape = 's32[2]{0}', space=sflag, size = 0x8, scoped, tag = 'scoped memory for tpu_custom_call.1']
    #allocation5 [shape = 'u8[32768]{0}', space=vmem, size = 0x8000, scoped, tag = 'output window, operand 0']
    %7 = vsyncpa [#allocation3], 0
    %s8 = scalar_lea.sflag [#allocation3], 1
    %9 = vsyncpa %s8, 0
    %10 = vsyncpa [#allocation4], 0
    %s11 = scalar_lea.sflag [#allocation4], 1
    %12 = vsyncpa %s11, 0
    loop: start=0, step=1, limit=4
    $region2: #{tpu_custom_call.1} parent=1 // loop_pre_header
      _
    $region3: #{tpu_custom_call.1} parent=1 // loop_header
      %s14 = sphi 0, %s18
      %p15 = scmp.ge.s32.totalorder %s14, 4
      %s22 = sphi 0, %s22
      %s24 = sphi 0, %s22
      %s25 = sphi 0, %s24
      %s39 = sphi 0, %s25
      %s45 = sphi 0, %s47
      %s48 = sphi 0, %s45
      %s49 = sphi 0, %s48
      %s65 = sphi 0, %s49
      %s71 = sphi 0, %s73
      %s74 = sphi 0, %s71
      %s75 = sphi 0, %s74
      %s91 = sphi 0, %s75
    $region4: #{tpu_custom_call.1} parent=1 // loop_header_branch
      %17 = sbr.rel (%p15) target = $region8
    $region5: #{tpu_custom_call.1} parent=1 // loop_body
      %s19 = ssub.s32 %s14, 1
      %s20 = ssub.s32 %s14, 2
      %s21 = sadd.s32 %s14, 1
      %s23 = sadd.s32 %s22, 1
      %p26 = scmp.eq.s32.totalorder %s14, 1
      %p27 = scmp.ne.s32.totalorder %s22, %s24
      %p28 = scmp.eq.s32.totalorder %s14, 0
      %p29 = por %p27, %p28
      %p30 = scmp.ne.s32.totalorder %s22, %s24
      %p31 = scmp.eq.s32.totalorder %s19, 1
      %p32 = por %p30, %p31
      %p33 = scmp.ne.s32.totalorder %s24, %s25
      %p34 = scmp.eq.s32.totalorder %s19, 0
      %p35 = por %p33, %p34
      %p36 = scmp.ne.s32.totalorder %s24, %s25
      %p37 = scmp.eq.s32.totalorder %s20, 1
      %p38 = por %p36, %p37
      %p40 = scmp.ne.s32.totalorder %s25, %s39
      %p41 = scmp.eq.s32.totalorder %s20, 0
      %p42 = por %p40, %p41
      %s43 = ssub.s32 %s14, %s21
      %p44 = scmp.eq.s32.totalorder %s43, 0
      %s46 = sadd.s32 %s45, 1
      %s47 = scalar_select %p44, %s45, %s46
      %p50 = pneg %p44
      %p51 = scmp.eq.s32.totalorder %s14, 1
      %p52 = por %p50, %p51
      %p53 = scmp.ne.s32.totalorder %s45, %s48
      %p54 = scmp.eq.s32.totalorder %s14, 0
      %p55 = por %p53, %p54
      %p56 = scmp.ne.s32.totalorder %s45, %s48
      %p57 = scmp.eq.s32.totalorder %s19, 1
      %p58 = por %p56, %p57
      %p59 = scmp.ne.s32.totalorder %s48, %s49
      %p60 = scmp.eq.s32.totalorder %s19, 0
      %p61 = por %p59, %p60
      %p62 = scmp.ne.s32.totalorder %s48, %s49
      %p63 = scmp.eq.s32.totalorder %s20, 1
      %p64 = por %p62, %p63
      %p66 = scmp.ne.s32.totalorder %s49, %s65
      %p67 = scmp.eq.s32.totalorder %s20, 0
      %p68 = por %p66, %p67
      %s69 = ssub.s32 %s14, %s21
      %p70 = scmp.eq.s32.totalorder %s69, 0
      %s72 = sadd.s32 %s71, 1
      %s73 = scalar_select %p70, %s71, %s72
      %p76 = pneg %p70
      %p77 = scmp.eq.s32.totalorder %s14, 1
      %p78 = por %p76, %p77
      %p79 = scmp.ne.s32.totalorder %s71, %s74
      %p80 = scmp.eq.s32.totalorder %s14, 0
      %p81 = por %p79, %p80
      %p82 = scmp.ne.s32.totalorder %s71, %s74
      %p83 = scmp.eq.s32.totalorder %s19, 1
      %p84 = por %p82, %p83
      %p85 = scmp.ne.s32.totalorder %s74, %s75
      %p86 = scmp.eq.s32.totalorder %s19, 0
      %p87 = por %p85, %p86
      %p88 = scmp.ne.s32.totalorder %s74, %s75
      %p89 = scmp.eq.s32.totalorder %s20, 1
      %p90 = por %p88, %p89
      %p92 = scmp.ne.s32.totalorder %s75, %s91
      %p93 = scmp.eq.s32.totalorder %s20, 0
      %p94 = por %p92, %p93
      %p95 = scmp.le.s32.totalorder 1, %s14
      %p96 = scmp.lt.s32.totalorder %s14, 3
      %p97 = pnand %p95, %p96
      %p98 = pneg %p97
      // Predicated region
      $region9: #{tpu_custom_call.1} parent=5 // pred_check
        _
      $region10: #{tpu_custom_call.1} parent=5 // pred_check_branch
        %100 = sbr.rel (%p97) target = $region12
      $region11: #{tpu_custom_call.1} parent=5 // pred_region
        %s101 = ssub.s32 %s14, 1
        // Predicated region
        $region13: #{tpu_custom_call.1} parent=11 // pred_check
          %p102 = pneg %p35
        $region14: #{tpu_custom_call.1} parent=11 // pred_check_branch
          %104 = sbr.rel (%p102) target = $region16
        $region15: #{tpu_custom_call.1} parent=11 // pred_region
          _
        $region16: #{tpu_custom_call.1} parent=11 // pred_fallthru
          _
      $region12: #{tpu_custom_call.1} parent=5 // pred_fallthru
        _
      %p105 = scmp.lt.s32.totalorder %s14, 2
      // Predicated region
      $region17: #{tpu_custom_call.1} parent=5 // pred_check
        %p106 = pneg %p105
      $region18: #{tpu_custom_call.1} parent=5 // pred_check_branch
        %108 = sbr.rel (%p106) target = $region20
      $region19: #{tpu_custom_call.1} parent=5 // pred_region
        // Predicated region
        $region21: #{tpu_custom_call.1} parent=19 // pred_check
          %p109 = pneg %p55
        $region22: #{tpu_custom_call.1} parent=19 // pred_check_branch
          %111 = sbr.rel (%p109) target = $region24
        $region23: #{tpu_custom_call.1} parent=19 // pred_region
          %s112 = sand.u32 %s45, 1
          %s113 = scalar_lea.sflag [#allocation3], %s112
          %s114 = sand.u32 %s45, 1
          %s115 = smul.addr %s114, 256
          %s116 = scalar_lea.vmem [#allocation2], %s115
          %s117 = smul.u32 32, %s14
          %s119 = ssub.s32 4096, 4096
          %120 = vsyncadd %s113, %s119
          %s121 = smul.addr %s117, 128
          %s122 = scalar_lea.hbm %s1, %s121
          %s124 = sshll.u32 %s116, 4
          %s125 = int_to_ptr.vmem [resolvable:$true] %s124
          %127 = dma.hbm_to_vmem [thread:$0]  %s122, 4096, %s125, %s113
        $region24: #{tpu_custom_call.1} parent=19 // pred_fallthru
          _
      $region20: #{tpu_custom_call.1} parent=5 // pred_fallthru
        _
      %p128 = scmp.le.s32.totalorder 1, %s14
      %p129 = scmp.lt.s32.totalorder %s14, 3
      %p130 = pnand %p128, %p129
      %p131 = pneg %p130
      // Predicated region
      $region25: #{tpu_custom_call.1} parent=5 // pred_check
        _
      $region26: #{tpu_custom_call.1} parent=5 // pred_check_branch
        %133 = sbr.rel (%p130) target = $region28
      $region27: #{tpu_custom_call.1} parent=5 // pred_region
        %s134 = ssub.s32 %s14, 1
        %s135 = sand.u32 %s48, 1
        %s136 = scalar_lea.sflag [#allocation3], %s135
        %s137 = sand.u32 %s48, 1
        %s138 = smul.addr %s137, 256
        %s139 = scalar_lea.vmem [#allocation2], %s138
        // Predicated region
        $region29: #{tpu_custom_call.1} parent=27 // pred_check
          %p140 = pneg %p61
        $region30: #{tpu_custom_call.1} parent=27 // pred_check_branch
          %142 = sbr.rel (%p140) target = $region32
        $region31: #{tpu_custom_call.1} parent=27 // pred_region
          %143 = dma.done %s136, 4096
        $region32: #{tpu_custom_call.1} parent=27 // pred_fallthru
          _
        %p144 = pneg %p35
        %p145 = pneg %p32
        %s146 = sand.u32 %s48, 1
        %s147 = scalar_lea.sflag [#allocation3], %s146
        %s148 = sand.u32 %s48, 1
        %s149 = smul.addr %s148, 256
        %s150 = scalar_lea.vmem [#allocation2], %s149
        %p151 = pneg %p61
        %p152 = pneg %p58
        %p153 = pneg %p87
        %p154 = pneg %p84
        %s155 = sand.u32 %s74, 1
        %s156 = scalar_lea.sflag [#allocation4], %s155
        %s157 = sand.u32 %s74, 1
        %s158 = smul.addr %s157, 32
        %s159 = scalar_lea.vmem [#allocation5], %s158
        %s160 = smul.u32 32, %s19
        %s161 = smul.u32 32, %s19
        %v162 = vld [vmem:[%s0] sm:$0xff]
        %v163 = vld [vmem:[%s139] sm:$0xff]
        %v164 = vld [vmem:[%s139 + $0x8] sm:$0xff]
        %v165 = vld [vmem:[%s139 + $0x10] sm:$0xff]
        %v166 = vld [vmem:[%s139 + $0x18] sm:$0xff]
        %v167 = vld [vmem:[%s139 + $0x20] sm:$0xff]
        %v168 = vld [vmem:[%s139 + $0x28] sm:$0xff]
        %v169 = vld [vmem:[%s139 + $0x30] sm:$0xff]
        %v170 = vld [vmem:[%s139 + $0x38] sm:$0xff]
        %v171 = vld [vmem:[%s139 + $0x40] sm:$0xff]
        %v172 = vld [vmem:[%s139 + $0x48] sm:$0xff]
        %v173 = vld [vmem:[%s139 + $0x50] sm:$0xff]
        %v174 = vld [vmem:[%s139 + $0x58] sm:$0xff]
        %v175 = vld [vmem:[%s139 + $0x60] sm:$0xff]
        %v176 = vld [vmem:[%s139 + $0x68] sm:$0xff]
        %v177 = vld [vmem:[%s139 + $0x70] sm:$0xff]
        %v178 = vld [vmem:[%s139 + $0x78] sm:$0xff]
        %v179 = vld [vmem:[%s139 + $0x80] sm:$0xff]
        %v180 = vld [vmem:[%s139 + $0x88] sm:$0xff]
        %v181 = vld [vmem:[%s139 + $0x90] sm:$0xff]
        %v182 = vld [vmem:[%s139 + $0x98] sm:$0xff]
        %v183 = vld [vmem:[%s139 + $0xa0] sm:$0xff]
        %v184 = vld [vmem:[%s139 + $0xa8] sm:$0xff]
        %v185 = vld [vmem:[%s139 + $0xb0] sm:$0xff]
        %v186 = vld [vmem:[%s139 + $0xb8] sm:$0xff]
        %v187 = vld [vmem:[%s139 + $0xc0] sm:$0xff]
        %v188 = vld [vmem:[%s139 + $0xc8] sm:$0xff]
        %v189 = vld [vmem:[%s139 + $0xd0] sm:$0xff]
        %v190 = vld [vmem:[%s139 + $0xd8] sm:$0xff]
        %v191 = vld [vmem:[%s139 + $0xe0] sm:$0xff]
        %v192 = vld [vmem:[%s139 + $0xe8] sm:$0xff]
        %v193 = vld [vmem:[%s139 + $0xf0] sm:$0xff]
        %v194 = vld [vmem:[%s139 + $0xf8] sm:$0xff]
        %196 = vset.pattern.permute.xlu0 0
        %197 = vperm.xlu0 %196, %v162
        %v198 = vpop.permute.xlu0 %197
        %v200 = vmul.f32 %v198, %v163
        %v201 = vmul.f32 %v198, %v164
        %v202 = vmul.f32 %v198, %v165
        %v203 = vmul.f32 %v198, %v166
        %v204 = vmul.f32 %v198, %v167
        %v205 = vmul.f32 %v198, %v168
        %v206 = vmul.f32 %v198, %v169
        %v207 = vmul.f32 %v198, %v170
        %v208 = vmul.f32 %v198, %v171
        %v209 = vmul.f32 %v198, %v172
        %v210 = vmul.f32 %v198, %v173
        %v211 = vmul.f32 %v198, %v174
        %v212 = vmul.f32 %v198, %v175
        %v213 = vmul.f32 %v198, %v176
        %v214 = vmul.f32 %v198, %v177
        %v215 = vmul.f32 %v198, %v178
        %v216 = vmul.f32 %v198, %v179
        %v217 = vmul.f32 %v198, %v180
        %v218 = vmul.f32 %v198, %v181
        %v219 = vmul.f32 %v198, %v182
        %v220 = vmul.f32 %v198, %v183
        %v221 = vmul.f32 %v198, %v184
        %v222 = vmul.f32 %v198, %v185
        %v223 = vmul.f32 %v198, %v186
        %v224 = vmul.f32 %v198, %v187
        %v225 = vmul.f32 %v198, %v188
        %v226 = vmul.f32 %v198, %v189
        %v227 = vmul.f32 %v198, %v190
        %v228 = vmul.f32 %v198, %v191
        %v229 = vmul.f32 %v198, %v192
        %v230 = vmul.f32 %v198, %v193
        %v231 = vmul.f32 %v198, %v194
        %v232 = vrot.slane %v200, 4
        %v233 = vadd.f32 %v200, %v232
        %v234 = vrot.slane %v233, 2
        %v235 = vadd.f32 %v233, %v234
        %v236 = vrot.slane %v235, 1
        %v237 = vadd.f32 %v235, %v236
        %v238 = vrot.slane %v201, 4
        %v239 = vadd.f32 %v201, %v238
        %v240 = vrot.slane %v239, 2
        %v241 = vadd.f32 %v239, %v240
        %v242 = vrot.slane %v241, 1
        %v243 = vadd.f32 %v241, %v242
        %v244 = vrot.slane %v202, 4
        %v245 = vadd.f32 %v202, %v244
        %v246 = vrot.slane %v245, 2
        %v247 = vadd.f32 %v245, %v246
        %v248 = vrot.slane %v247, 1
        %v249 = vadd.f32 %v247, %v248
        %v250 = vrot.slane %v203, 4
        %v251 = vadd.f32 %v203, %v250
        %v252 = vrot.slane %v251, 2
        %v253 = vadd.f32 %v251, %v252
        %v254 = vrot.slane %v253, 1
        %v255 = vadd.f32 %v253, %v254
        %v256 = vrot.slane %v204, 4
        %v257 = vadd.f32 %v204, %v256
        %v258 = vrot.slane %v257, 2
        %v259 = vadd.f32 %v257, %v258
        %v260 = vrot.slane %v259, 1
        %v261 = vadd.f32 %v259, %v260
        %v262 = vrot.slane %v205, 4
        %v263 = vadd.f32 %v205, %v262
        %v264 = vrot.slane %v263, 2
        %v265 = vadd.f32 %v263, %v264
        %v266 = vrot.slane %v265, 1
        %v267 = vadd.f32 %v265, %v266
        %v268 = vrot.slane %v206, 4
        %v269 = vadd.f32 %v206, %v268
        %v270 = vrot.slane %v269, 2
        %v271 = vadd.f32 %v269, %v270
        %v272 = vrot.slane %v271, 1
        %v273 = vadd.f32 %v271, %v272
        %v274 = vrot.slane %v207, 4
        %v275 = vadd.f32 %v207, %v274
        %v276 = vrot.slane %v275, 2
        %v277 = vadd.f32 %v275, %v276
        %v278 = vrot.slane %v277, 1
        %v279 = vadd.f32 %v277, %v278
        %v280 = vrot.slane %v208, 4
        %v281 = vadd.f32 %v208, %v280
        %v282 = vrot.slane %v281, 2
        %v283 = vadd.f32 %v281, %v282
        %v284 = vrot.slane %v283, 1
        %v285 = vadd.f32 %v283, %v284
        %v286 = vrot.slane %v209, 4
        %v287 = vadd.f32 %v209, %v286
        %v288 = vrot.slane %v287, 2
        %v289 = vadd.f32 %v287, %v288
        %v290 = vrot.slane %v289, 1
        %v291 = vadd.f32 %v289, %v290
        %v292 = vrot.slane %v210, 4
        %v293 = vadd.f32 %v210, %v292
        %v294 = vrot.slane %v293, 2
        %v295 = vadd.f32 %v293, %v294
        %v296 = vrot.slane %v295, 1
        %v297 = vadd.f32 %v295, %v296
        %v298 = vrot.slane %v211, 4
        %v299 = vadd.f32 %v211, %v298
        %v300 = vrot.slane %v299, 2
        %v301 = vadd.f32 %v299, %v300
        %v302 = vrot.slane %v301, 1
        %v303 = vadd.f32 %v301, %v302
        %v304 = vrot.slane %v212, 4
        %v305 = vadd.f32 %v212, %v304
        %v306 = vrot.slane %v305, 2
        %v307 = vadd.f32 %v305, %v306
        %v308 = vrot.slane %v307, 1
        %v309 = vadd.f32 %v307, %v308
        %v310 = vrot.slane %v213, 4
        %v311 = vadd.f32 %v213, %v310
        %v312 = vrot.slane %v311, 2
        %v313 = vadd.f32 %v311, %v312
        %v314 = vrot.slane %v313, 1
        %v315 = vadd.f32 %v313, %v314
        %v316 = vrot.slane %v214, 4
        %v317 = vadd.f32 %v214, %v316
        %v318 = vrot.slane %v317, 2
        %v319 = vadd.f32 %v317, %v318
        %v320 = vrot.slane %v319, 1
        %v321 = vadd.f32 %v319, %v320
        %v322 = vrot.slane %v215, 4
        %v323 = vadd.f32 %v215, %v322
        %v324 = vrot.slane %v323, 2
        %v325 = vadd.f32 %v323, %v324
        %v326 = vrot.slane %v325, 1
        %v327 = vadd.f32 %v325, %v326
        %v328 = vrot.slane %v216, 4
        %v329 = vadd.f32 %v216, %v328
        %v330 = vrot.slane %v329, 2
        %v331 = vadd.f32 %v329, %v330
        %v332 = vrot.slane %v331, 1
        %v333 = vadd.f32 %v331, %v332
        %v334 = vrot.slane %v217, 4
        %v335 = vadd.f32 %v217, %v334
        %v336 = vrot.slane %v335, 2
        %v337 = vadd.f32 %v335, %v336
        %v338 = vrot.slane %v337, 1
        %v339 = vadd.f32 %v337, %v338
        %v340 = vrot.slane %v218, 4
        %v341 = vadd.f32 %v218, %v340
        %v342 = vrot.slane %v341, 2
        %v343 = vadd.f32 %v341, %v342
        %v344 = vrot.slane %v343, 1
        %v345 = vadd.f32 %v343, %v344
        %v346 = vrot.slane %v219, 4
        %v347 = vadd.f32 %v219, %v346
        %v348 = vrot.slane %v347, 2
        %v349 = vadd.f32 %v347, %v348
        %v350 = vrot.slane %v349, 1
        %v351 = vadd.f32 %v349, %v350
        %v352 = vrot.slane %v220, 4
        %v353 = vadd.f32 %v220, %v352
        %v354 = vrot.slane %v353, 2
        %v355 = vadd.f32 %v353, %v354
        %v356 = vrot.slane %v355, 1
        %v357 = vadd.f32 %v355, %v356
        %v358 = vrot.slane %v221, 4
        %v359 = vadd.f32 %v221, %v358
        %v360 = vrot.slane %v359, 2
        %v361 = vadd.f32 %v359, %v360
        %v362 = vrot.slane %v361, 1
        %v363 = vadd.f32 %v361, %v362
        %v364 = vrot.slane %v222, 4
        %v365 = vadd.f32 %v222, %v364
        %v366 = vrot.slane %v365, 2
        %v367 = vadd.f32 %v365, %v366
        %v368 = vrot.slane %v367, 1
        %v369 = vadd.f32 %v367, %v368
        %v370 = vrot.slane %v223, 4
        %v371 = vadd.f32 %v223, %v370
        %v372 = vrot.slane %v371, 2
        %v373 = vadd.f32 %v371, %v372
        %v374 = vrot.slane %v373, 1
        %v375 = vadd.f32 %v373, %v374
        %v376 = vrot.slane %v224, 4
        %v377 = vadd.f32 %v224, %v376
        %v378 = vrot.slane %v377, 2
        %v379 = vadd.f32 %v377, %v378
        %v380 = vrot.slane %v379, 1
        %v381 = vadd.f32 %v379, %v380
        %v382 = vrot.slane %v225, 4
        %v383 = vadd.f32 %v225, %v382
        %v384 = vrot.slane %v383, 2
        %v385 = vadd.f32 %v383, %v384
        %v386 = vrot.slane %v385, 1
        %v387 = vadd.f32 %v385, %v386
        %v388 = vrot.slane %v226, 4
        %v389 = vadd.f32 %v226, %v388
        %v390 = vrot.slane %v389, 2
        %v391 = vadd.f32 %v389, %v390
        %v392 = vrot.slane %v391, 1
        %v393 = vadd.f32 %v391, %v392
        %v394 = vrot.slane %v227, 4
        %v395 = vadd.f32 %v227, %v394
        %v396 = vrot.slane %v395, 2
        %v397 = vadd.f32 %v395, %v396
        %v398 = vrot.slane %v397, 1
        %v399 = vadd.f32 %v397, %v398
        %v400 = vrot.slane %v228, 4
        %v401 = vadd.f32 %v228, %v400
        %v402 = vrot.slane %v401, 2
        %v403 = vadd.f32 %v401, %v402
        %v404 = vrot.slane %v403, 1
        %v405 = vadd.f32 %v403, %v404
        %v406 = vrot.slane %v229, 4
        %v407 = vadd.f32 %v229, %v406
        %v408 = vrot.slane %v407, 2
        %v409 = vadd.f32 %v407, %v408
        %v410 = vrot.slane %v409, 1
        %v411 = vadd.f32 %v409, %v410
        %v412 = vrot.slane %v230, 4
        %v413 = vadd.f32 %v230, %v412
        %v414 = vrot.slane %v413, 2
        %v415 = vadd.f32 %v413, %v414
        %v416 = vrot.slane %v415, 1
        %v417 = vadd.f32 %v415, %v416
        %v418 = vrot.slane %v231, 4
        %v419 = vadd.f32 %v231, %v418
        %v420 = vrot.slane %v419, 2
        %v421 = vadd.f32 %v419, %v420
        %v422 = vrot.slane %v421, 1
        %v423 = vadd.f32 %v421, %v422
        %v456 = vcombine.low %v237, %v243
        %v457 = vcombine.low %v249, %v255
        %v458 = vcombine.low %v261, %v267
        %v459 = vcombine.low %v273, %v279
        %v461 = vunpack.c.l.s4 1966171168
        %v462 = vunpack.c.0.s8 %v461
        %v463 = vlaneseq
        %v464 = vshrl.u32 %v463, 7
        %v465 = vsub.s32 %v462, %v464
        %v466 = vrot.slane %v456, %v465
        %v468 = vunpack.c.l.s4 1966171168
        %v469 = vunpack.c.0.s8 %v468
        %v470 = vlaneseq
        %v471 = vshrl.u32 %v470, 7
        %v472 = vsub.s32 %v469, %v471
        %v473 = vrot.slane %v457, %v472
        %v475 = vunpack.c.l.s4 1966171168
        %v476 = vunpack.c.0.s8 %v475
        %v477 = vlaneseq
        %v478 = vshrl.u32 %v477, 7
        %v479 = vsub.s32 %v476, %v478
        %v480 = vrot.slane %v458, %v479
        %v482 = vunpack.c.l.s4 1966171168
        %v483 = vunpack.c.0.s8 %v482
        %v484 = vlaneseq
        %v485 = vshrl.u32 %v484, 7
        %v486 = vsub.s32 %v483, %v485
        %v487 = vrot.slane %v459, %v486
        %v488 = vcombine.low %v466, %v473
        %v489 = vcombine.low %v480, %v487
        %v491 = vunpack.c.l.s4 1966171168
        %v492 = vunpack.c.0.s8 %v491
        %v493 = vlaneseq
        %v494 = vshrl.u32 %v493, 7
        %v495 = vsub.s32 %v492, %v494
        %v496 = vrot.slane %v488, %v495
        %v498 = vunpack.c.l.s4 1966171168
        %v499 = vunpack.c.0.s8 %v498
        %v500 = vlaneseq
        %v501 = vshrl.u32 %v500, 7
        %v502 = vsub.s32 %v499, %v501
        %v503 = vrot.slane %v489, %v502
        %v504 = vcombine.low %v496, %v503
        %v505 = vcombine.low %v285, %v291
        %v506 = vcombine.low %v297, %v303
        %v507 = vcombine.low %v309, %v315
        %v508 = vcombine.low %v321, %v327
        %v510 = vunpack.c.l.s4 1966171168
        %v511 = vunpack.c.0.s8 %v510
        %v512 = vlaneseq
        %v513 = vshrl.u32 %v512, 7
        %v514 = vsub.s32 %v511, %v513
        %v515 = vrot.slane %v505, %v514
        %v517 = vunpack.c.l.s4 1966171168
        %v518 = vunpack.c.0.s8 %v517
        %v519 = vlaneseq
        %v520 = vshrl.u32 %v519, 7
        %v521 = vsub.s32 %v518, %v520
        %v522 = vrot.slane %v506, %v521
        %v524 = vunpack.c.l.s4 1966171168
        %v525 = vunpack.c.0.s8 %v524
        %v526 = vlaneseq
        %v527 = vshrl.u32 %v526, 7
        %v528 = vsub.s32 %v525, %v527
        %v529 = vrot.slane %v507, %v528
        %v531 = vunpack.c.l.s4 1966171168
        %v532 = vunpack.c.0.s8 %v531
        %v533 = vlaneseq
        %v534 = vshrl.u32 %v533, 7
        %v535 = vsub.s32 %v532, %v534
        %v536 = vrot.slane %v508, %v535
        %v537 = vcombine.low %v515, %v522
        %v538 = vcombine.low %v529, %v536
        %v540 = vunpack.c.l.s4 1966171168
        %v541 = vunpack.c.0.s8 %v540
        %v542 = vlaneseq
        %v543 = vshrl.u32 %v542, 7
        %v544 = vsub.s32 %v541, %v543
        %v545 = vrot.slane %v537, %v544
        %v547 = vunpack.c.l.s4 1966171168
        %v548 = vunpack.c.0.s8 %v547
        %v549 = vlaneseq
        %v550 = vshrl.u32 %v549, 7
        %v551 = vsub.s32 %v548, %v550
        %v552 = vrot.slane %v538, %v551
        %v553 = vcombine.low %v545, %v552
        %v554 = vcombine.low %v333, %v339
        %v555 = vcombine.low %v345, %v351
        %v556 = vcombine.low %v357, %v363
        %v557 = vcombine.low %v369, %v375
        %v559 = vunpack.c.l.s4 1966171168
        %v560 = vunpack.c.0.s8 %v559
        %v561 = vlaneseq
        %v562 = vshrl.u32 %v561, 7
        %v563 = vsub.s32 %v560, %v562
        %v564 = vrot.slane %v554, %v563
        %v566 = vunpack.c.l.s4 1966171168
        %v567 = vunpack.c.0.s8 %v566
        %v568 = vlaneseq
        %v569 = vshrl.u32 %v568, 7
        %v570 = vsub.s32 %v567, %v569
        %v571 = vrot.slane %v555, %v570
        %v573 = vunpack.c.l.s4 1966171168
        %v574 = vunpack.c.0.s8 %v573
        %v575 = vlaneseq
        %v576 = vshrl.u32 %v575, 7
        %v577 = vsub.s32 %v574, %v576
        %v578 = vrot.slane %v556, %v577
        %v580 = vunpack.c.l.s4 1966171168
        %v581 = vunpack.c.0.s8 %v580
        %v582 = vlaneseq
        %v583 = vshrl.u32 %v582, 7
        %v584 = vsub.s32 %v581, %v583
        %v585 = vrot.slane %v557, %v584
        %v586 = vcombine.low %v564, %v571
        %v587 = vcombine.low %v578, %v585
        %v589 = vunpack.c.l.s4 1966171168
        %v590 = vunpack.c.0.s8 %v589
        %v591 = vlaneseq
        %v592 = vshrl.u32 %v591, 7
        %v593 = vsub.s32 %v590, %v592
        %v594 = vrot.slane %v586, %v593
        %v596 = vunpack.c.l.s4 1966171168
        %v597 = vunpack.c.0.s8 %v596
        %v598 = vlaneseq
        %v599 = vshrl.u32 %v598, 7
        %v600 = vsub.s32 %v597, %v599
        %v601 = vrot.slane %v587, %v600
        %v602 = vcombine.low %v594, %v601
        %v603 = vcombine.low %v381, %v387
        %v604 = vcombine.low %v393, %v399
        %v605 = vcombine.low %v405, %v411
        %v606 = vcombine.low %v417, %v423
        %v608 = vunpack.c.l.s4 1966171168
        %v609 = vunpack.c.0.s8 %v608
        %v610 = vlaneseq
        %v611 = vshrl.u32 %v610, 7
        %v612 = vsub.s32 %v609, %v611
        %v613 = vrot.slane %v603, %v612
        %v615 = vunpack.c.l.s4 1966171168
        %v616 = vunpack.c.0.s8 %v615
        %v617 = vlaneseq
        %v618 = vshrl.u32 %v617, 7
        %v619 = vsub.s32 %v616, %v618
        %v620 = vrot.slane %v604, %v619
        %v622 = vunpack.c.l.s4 1966171168
        %v623 = vunpack.c.0.s8 %v622
        %v624 = vlaneseq
        %v625 = vshrl.u32 %v624, 7
        %v626 = vsub.s32 %v623, %v625
        %v627 = vrot.slane %v605, %v626
        %v629 = vunpack.c.l.s4 1966171168
        %v630 = vunpack.c.0.s8 %v629
        %v631 = vlaneseq
        %v632 = vshrl.u32 %v631, 7
        %v633 = vsub.s32 %v630, %v632
        %v634 = vrot.slane %v606, %v633
        %v635 = vcombine.low %v613, %v620
        %v636 = vcombine.low %v627, %v634
        %v638 = vunpack.c.l.s4 1966171168
        %v639 = vunpack.c.0.s8 %v638
        %v640 = vlaneseq
        %v641 = vshrl.u32 %v640, 7
        %v642 = vsub.s32 %v639, %v641
        %v643 = vrot.slane %v635, %v642
        %v645 = vunpack.c.l.s4 1966171168
        %v646 = vunpack.c.0.s8 %v645
        %v647 = vlaneseq
        %v648 = vshrl.u32 %v647, 7
        %v649 = vsub.s32 %v646, %v648
        %v650 = vrot.slane %v636, %v649
        %v651 = vcombine.low %v643, %v650
        %656 = vst [vmem:[%s159] sm:$0xff] %v504
        %657 = vst [vmem:[%s159 + $0x8] sm:$0xff] %v553
        %658 = vst [vmem:[%s159 + $0x10] sm:$0xff] %v602
        %659 = vst [vmem:[%s159 + $0x18] sm:$0xff] %v651
        %s660 = sand.u32 %s74, 1
        %s661 = scalar_lea.sflag [#allocation4], %s660
        %s662 = sand.u32 %s74, 1
        %s663 = smul.addr %s662, 32
        %s664 = scalar_lea.vmem [#allocation5], %s663
        // Predicated region
        $region33: #{tpu_custom_call.1} parent=27 // pred_check
          %p665 = pneg %p84
        $region34: #{tpu_custom_call.1} parent=27 // pred_check_branch
          %667 = sbr.rel (%p665) target = $region36
        $region35: #{tpu_custom_call.1} parent=27 // pred_region
          %s668 = smul.u32 32, %s19
          %s670 = ssub.s32 512, 512
          %671 = vsyncadd %s661, %s670
          %s672 = smul.addr %s668, 16
          %s673 = scalar_lea.hbm %s2, %s672
          %s675 = sshll.u32 %s664, 4
          %s676 = int_to_ptr.vmem [resolvable:$true] %s675
          %678 = dma.vmem_to_hbm [thread:$0]  %s676, 512, %s673, %s661
        $region36: #{tpu_custom_call.1} parent=27 // pred_fallthru
          _
      $region28: #{tpu_custom_call.1} parent=5 // pred_fallthru
        _
      %p679 = scmp.le.s32.totalorder 2, %s14
      // Predicated region
      $region37: #{tpu_custom_call.1} parent=5 // pred_check
        %p680 = pneg %p679
      $region38: #{tpu_custom_call.1} parent=5 // pred_check_branch
        %682 = sbr.rel (%p680) target = $region40
      $region39: #{tpu_custom_call.1} parent=5 // pred_region
        %s683 = ssub.s32 %s14, 2
        // Predicated region
        $region41: #{tpu_custom_call.1} parent=39 // pred_check
          %p684 = pneg %p90
        $region42: #{tpu_custom_call.1} parent=39 // pred_check_branch
          %686 = sbr.rel (%p684) target = $region44
        $region43: #{tpu_custom_call.1} parent=39 // pred_region
          %s687 = sand.u32 %s75, 1
          %s688 = scalar_lea.sflag [#allocation4], %s687
          %s689 = sand.u32 %s75, 1
          %s690 = smul.addr %s689, 32
          %s691 = scalar_lea.vmem [#allocation5], %s690
          %692 = dma.done %s688, 512
        $region44: #{tpu_custom_call.1} parent=39 // pred_fallthru
          _
      $region40: #{tpu_custom_call.1} parent=5 // pred_fallthru
        _
    $region6: #{tpu_custom_call.1} parent=1 // loop_footer
      %s18 = sadd.s32 1, %s14
    $region7: #{tpu_custom_call.1} parent=1 // loop_footer_branch
      %13 = sbr.rel target = $region3
    $region8: #{tpu_custom_call.1} parent=1 // loop_exit
      _
    %693 = vsyncpa [#allocation3], 1
    %s694 = scalar_lea.sflag [#allocation3], 1
    %695 = vsyncpa %s694, 1
    %696 = vsyncpa [#allocation4], 1
    %s697 = scalar_lea.sflag [#allocation4], 1
    %698 = vsyncpa %s697, 1

</llo_original>
